<compile_context>
chip_gen: v5e
topology: v5e:2x2
jax: 0.10.0
libtpu: 0.0.40
codegen_flags: <defaults>
</compile_context>

<pallas_src>
import functools

import jax
import jax.numpy as jnp
import numpy as np
from jax import lax
from jax.experimental import pallas as pl
from jax.experimental.pallas import tpu as pltpu

C_IN, C_MID, C_OUT = 1, 16, 1   # channel sizes from the nn.Module __init__
LANE = 128


def _round_up(x, m):
    return (x + m - 1) // m * m


def _geom(H, W):
    """Static constants for the row-padded flat (lane) layout."""
    Wp, Hp = W + 2, H + 2
    L = Hp * Wp                            # flattened padded image length
    halo = Wp + 1                          # max |centered 3x3 tap offset| (flat)
    LX = _round_up(L + 2 * halo, LANE)     # h1 slab width (multiple of 128)
    ML = max(halo, (LX - L) // 2)          # left margin of valid region in LX
    off_in = _round_up(ML + halo, 8)       # where xpadflat starts in the input row
    LIN = _round_up(off_in + (halo - ML) + LX, LANE)   # input row width
    return Wp, L, LX, ML, off_in, LIN


def _refine_kernel(H, W, x_ref, mask_ref, w1_ref, b1_ref, w2_ref, b2_ref,
                   out_ref, h1_ref):
    """One batch element per grid step; all channels / taps vectorized.

    x_ref   : (1, LIN)     zero-padded, flattened, margined input     (VMEM)
    mask_ref: (1, LX)      1.0 at interior pixels of the padded grid  (VMEM)
    w1_ref  : (C_MID, 9)   conv1 weights, column t = tap kh*3+kw      (VMEM)
    b1_ref  : (C_MID, 1)   conv1 bias                                 (VMEM)
    w2_ref  : (C_MID, 9)   conv2 weights                              (VMEM)
    b2_ref  : (1,)         conv2 bias                                 (SMEM)
    out_ref : (1, L)       conv2 output in row-padded flat layout     (VMEM)
    h1_ref  : (C_MID, LX)  scratch: zero-padded ReLU(conv1), flat     (VMEM)
    """
    Wp, L, LX, ML, off_in, _ = _geom(H, W)
    # centered 3x3 tap offsets in the flattened padded layout
    doffs = [dh * Wp + dw for dh in (-1, 0, 1) for dw in (-1, 0, 1)]

    # ---- conv1 (1 -> 16): 9 lane-dense FMAs over a (C_MID, LX) slab --------
    acc1 = [jnp.zeros((C_MID, LX), jnp.float32) for _ in range(3)]
    for t, doff in enumerate(doffs):
        s = off_in - ML + doff                       # static, >= 0
        xw = x_ref[:, s:s + LX]                      # (1, LX) window
        acc1[t % 3] = acc1[t % 3] + w1_ref[:, t:t + 1] * xw   # (C_MID, LX)
    raw1 = (acc1[0] + acc1[1]) + (acc1[2] + b1_ref[...])
    # ReLU + one dense mask multiply zeroes the pad ring/margins; the store is
    # a single fully-unmasked (C_MID, LX) write (LX is a multiple of 128).
    h1_ref[...] = jnp.maximum(raw1, 0.0) * mask_ref[...]

    # ---- conv2 (16 -> 1): 9 lane-dense FMAs + one cross-sublane reduce -----
    acc2 = [jnp.zeros((C_MID, L), jnp.float32) for _ in range(3)]
    for t, doff in enumerate(doffs):
        s = ML + doff                                # static, >= 0
        hw = h1_ref[:, s:s + L]                      # (C_MID, L)
        acc2[t % 3] = acc2[t % 3] + w2_ref[:, t:t + 1] * hw
    acc = (acc2[0] + acc2[1]) + acc2[2]
    # channel sum is a cross-sublane reduce (XLU slot) + scalar bias from SMEM
    out_ref[...] = jnp.sum(acc, axis=0, keepdims=True) + b2_ref[0]


def refinement_forward(x_nchw, w1_oihw, b1, w2_oihw, b2):
    """Pallas forward. x_nchw: (B, 1, H, W) float32 -> (B, 1, H, W)."""
    B, _, H, W = x_nchw.shape
    Wp, L, LX, ML, off_in, LIN = _geom(H, W)
    Hp = H + 2
    f32 = jnp.float32

    # --- layout plumbing (no compute): pad + flatten + margin the input -----
    xpad = jnp.pad(x_nchw.reshape(B, H, W).astype(f32),
                   ((0, 0), (1, 1), (1, 1)))                       # (B, Hp, Wp)
    x_in = jnp.zeros((B, 1, LIN), f32).at[:, 0, off_in:off_in + L].set(
        xpad.reshape(B, L))

    # interior mask in the same flat layout
    m2d = jnp.zeros((Hp, Wp), f32).at[1:H + 1, 1:W + 1].set(1.0)
    mask = jnp.zeros((1, LX), f32).at[0, ML:ML + L].set(m2d.reshape(L))

    # weights as small VMEM tiles; column t = tap (kh*3 + kw)
    w1_mat = w1_oihw.reshape(C_MID, 9).astype(f32)                 # (16, 9)
    b1_col = b1.reshape(C_MID, 1).astype(f32)                      # (16, 1)
    w2_mat = w2_oihw.reshape(C_MID, 9).astype(f32)                 # (16, 9)
    b2_vec = b2.reshape(C_OUT).astype(f32)                         # (1,) -> SMEM

    kernel = functools.partial(_refine_kernel, H, W)
    out_flat = pl.pallas_call(
        kernel,
        out_shape=jax.ShapeDtypeStruct((B, 1, L), f32),
        grid_spec=pltpu.PrefetchScalarGridSpec(
            num_scalar_prefetch=0,
            grid=(B,),
            in_specs=[
                pl.BlockSpec((None, 1, LIN), lambda b: (b, 0, 0)),   # x, lane-dense
                pl.BlockSpec((1, LX), lambda b: (0, 0)),             # interior mask
                pl.BlockSpec((C_MID, 9), lambda b: (0, 0)),          # w1
                pl.BlockSpec((C_MID, 1), lambda b: (0, 0)),          # b1
                pl.BlockSpec((C_MID, 9), lambda b: (0, 0)),          # w2
                pl.BlockSpec(memory_space=pltpu.MemorySpace.SMEM),   # b2 scalar
            ],
            out_specs=pl.BlockSpec((None, 1, L), lambda b: (b, 0, 0)),
            scratch_shapes=[
                pltpu.VMEM((C_MID, LX), f32),     # zero-padded ReLU(conv1), flat
            ],
        ),
        compiler_params=pltpu.CompilerParams(
            dimension_semantics=("parallel",),
            vmem_limit_bytes=32 * 1024 * 1024),
    )(x_in, mask, w1_mat, b1_col, w2_mat, b2_vec)

    # --- layout plumbing: drop the pad ring and restore NCHW ----------------
    y = out_flat.reshape(B, Hp, Wp)[:, 1:H + 1, 1:W + 1]
    return y.reshape(B, C_OUT, H, W)


def reference_forward(x_nchw, w1_oihw, b1, w2_oihw, b2):
    """Pure-JAX reference (matches torch.nn.Conv2d semantics)."""
    dn = ("NCHW", "OIHW", "NCHW")
    y = lax.conv_general_dilated(x_nchw, w1_oihw, (1, 1), "SAME",
                                 dimension_numbers=dn)
    y = y + b1.reshape(1, -1, 1, 1)
    y = jnp.maximum(y, 0.0)
    y = lax.conv_general_dilated(y, w2_oihw, (1, 1), "SAME",
                                 dimension_numbers=dn)
    y = y + b2.reshape(1, -1, 1, 1)
    return y


if __name__ == "__main__":
    key = jax.random.PRNGKey(0)
    k_x, k_w1, k_b1, k_w2, k_b2 = jax.random.split(key, 5)

    B, H, W = 2, 16, 16
    x = jax.random.normal(k_x, (B, C_IN, H, W), jnp.float32)

    # Deterministic synthetic parameters (shapes match nn.Conv2d in __init__).
    w1 = jax.random.normal(k_w1, (C_MID, C_IN, 3, 3), jnp.float32) * 0.2
    b1 = jax.random.normal(k_b1, (C_MID,), jnp.float32) * 0.1
    w2 = jax.random.normal(k_w2, (C_OUT, C_MID, 3, 3), jnp.float32) * 0.2
    b2 = jax.random.normal(k_b2, (C_OUT,), jnp.float32) * 0.1

    out = refinement_forward(x, w1, b1, w2, b2)
    out = jax.block_until_ready(out)

    ref = reference_forward(x, w1, b1, w2, b2)
    np.testing.assert_allclose(np.asarray(out), np.asarray(ref),
                               rtol=1e-4, atol=1e-4)
    assert out.shape == (B, C_OUT, H, W)
    print("KERNEL_OK")
</pallas_src>

<mosaic_0001>
module attributes {stable_mosaic.version = 11 : i64} {
  func.func @_refine_kernel(%arg0: i32, %arg1: memref<1x1x512xf32, #tpu.memory_space<vmem>>, %arg2: memref<1x384xf32, #tpu.memory_space<vmem>>, %arg3: memref<16x9xf32, #tpu.memory_space<vmem>>, %arg4: memref<16x1xf32, #tpu.memory_space<vmem>>, %arg5: memref<16x9xf32, #tpu.memory_space<vmem>>, %arg6: memref<1xf32, #tpu.memory_space<smem>>, %arg7: memref<1x1x324xf32, #tpu.memory_space<vmem>>, %arg8: memref<16x384xf32, #tpu.memory_space<vmem>>) attributes {dimension_semantics = [#tpu.dimension_semantics<parallel>], iteration_bounds = array<i64: 2>, scalar_prefetch = 0 : i64, scratch_operands = 1 : i64, tpu.core_type = #tpu.core_type<tc>, window_params = [{transform_indices = @transform_0, window_bounds = array<i64: 1, 1, 512>}, {pipeline_mode = #tpu.pipeline_mode<synchronous>, transform_indices = @transform_1, window_bounds = array<i64: 1, 384>}, {pipeline_mode = #tpu.pipeline_mode<synchronous>, transform_indices = @transform_2, window_bounds = array<i64: 16, 9>}, {pipeline_mode = #tpu.pipeline_mode<synchronous>, transform_indices = @transform_3, window_bounds = array<i64: 16, 1>}, {pipeline_mode = #tpu.pipeline_mode<synchronous>, transform_indices = @transform_4, window_bounds = array<i64: 16, 9>}, {transform_indices = @transform_5, window_bounds = array<i64: 1>}, {transform_indices = @transform_6, window_bounds = array<i64: 1, 1, 324>}]} {
    %cst = arith.constant 0.000000e+00 : f32
    %0 = vector.broadcast %cst : f32 to vector<16x384xf32>
    %cst_0 = arith.constant 0.000000e+00 : f32
    %1 = vector.broadcast %cst_0 : f32 to vector<16x384xf32>
    %cst_1 = arith.constant 0.000000e+00 : f32
    %2 = vector.broadcast %cst_1 : f32 to vector<16x384xf32>
    %c0 = arith.constant 0 : index
    %c0_2 = arith.constant 0 : index
    %c7 = arith.constant 7 : index
    %3 = vector.load %arg1[%c0, %c0_2, %c7] : memref<1x1x512xf32, #tpu.memory_space<vmem>>, vector<1x1x384xf32>
    %4 = vector.shape_cast %3 : vector<1x1x384xf32> to vector<1x384xf32>
    %c0_3 = arith.constant 0 : index
    %c0_4 = arith.constant 0 : index
    %5 = vector.load %arg3[%c0_3, %c0_4] : memref<16x9xf32, #tpu.memory_space<vmem>>, vector<16x1xf32>
    %6 = vector.broadcast %5 : vector<16x1xf32> to vector<16x384xf32>
    %7 = vector.broadcast %4 : vector<1x384xf32> to vector<16x384xf32>
    %8 = arith.mulf %6, %7 : vector<16x384xf32>
    %9 = arith.addf %0, %8 : vector<16x384xf32>
    %c0_5 = arith.constant 0 : index
    %c0_6 = arith.constant 0 : index
    %c8 = arith.constant 8 : index
    %10 = vector.load %arg1[%c0_5, %c0_6, %c8] : memref<1x1x512xf32, #tpu.memory_space<vmem>>, vector<1x1x384xf32>
    %11 = vector.shape_cast %10 : vector<1x1x384xf32> to vector<1x384xf32>
    %c0_7 = arith.constant 0 : index
    %c1 = arith.constant 1 : index
    %12 = vector.load %arg3[%c0_7, %c1] : memref<16x9xf32, #tpu.memory_space<vmem>>, vector<16x1xf32>
    %13 = vector.broadcast %12 : vector<16x1xf32> to vector<16x384xf32>
    %14 = vector.broadcast %11 : vector<1x384xf32> to vector<16x384xf32>
    %15 = arith.mulf %13, %14 : vector<16x384xf32>
    %16 = arith.addf %1, %15 : vector<16x384xf32>
    %c0_8 = arith.constant 0 : index
    %c0_9 = arith.constant 0 : index
    %c9 = arith.constant 9 : index
    %17 = vector.load %arg1[%c0_8, %c0_9, %c9] : memref<1x1x512xf32, #tpu.memory_space<vmem>>, vector<1x1x384xf32>
    %18 = vector.shape_cast %17 : vector<1x1x384xf32> to vector<1x384xf32>
    %c0_10 = arith.constant 0 : index
    %c2 = arith.constant 2 : index
    %19 = vector.load %arg3[%c0_10, %c2] : memref<16x9xf32, #tpu.memory_space<vmem>>, vector<16x1xf32>
    %20 = vector.broadcast %19 : vector<16x1xf32> to vector<16x384xf32>
    %21 = vector.broadcast %18 : vector<1x384xf32> to vector<16x384xf32>
    %22 = arith.mulf %20, %21 : vector<16x384xf32>
    %23 = arith.addf %2, %22 : vector<16x384xf32>
    %c0_11 = arith.constant 0 : index
    %c0_12 = arith.constant 0 : index
    %c25 = arith.constant 25 : index
    %24 = vector.load %arg1[%c0_11, %c0_12, %c25] : memref<1x1x512xf32, #tpu.memory_space<vmem>>, vector<1x1x384xf32>
    %25 = vector.shape_cast %24 : vector<1x1x384xf32> to vector<1x384xf32>
    %c0_13 = arith.constant 0 : index
    %c3 = arith.constant 3 : index
    %26 = vector.load %arg3[%c0_13, %c3] : memref<16x9xf32, #tpu.memory_space<vmem>>, vector<16x1xf32>
    %27 = vector.broadcast %26 : vector<16x1xf32> to vector<16x384xf32>
    %28 = vector.broadcast %25 : vector<1x384xf32> to vector<16x384xf32>
    %29 = arith.mulf %27, %28 : vector<16x384xf32>
    %30 = arith.addf %9, %29 : vector<16x384xf32>
    %c0_14 = arith.constant 0 : index
    %c0_15 = arith.constant 0 : index
    %c26 = arith.constant 26 : index
    %31 = vector.load %arg1[%c0_14, %c0_15, %c26] : memref<1x1x512xf32, #tpu.memory_space<vmem>>, vector<1x1x384xf32>
    %32 = vector.shape_cast %31 : vector<1x1x384xf32> to vector<1x384xf32>
    %c0_16 = arith.constant 0 : index
    %c4 = arith.constant 4 : index
    %33 = vector.load %arg3[%c0_16, %c4] : memref<16x9xf32, #tpu.memory_space<vmem>>, vector<16x1xf32>
    %34 = vector.broadcast %33 : vector<16x1xf32> to vector<16x384xf32>
    %35 = vector.broadcast %32 : vector<1x384xf32> to vector<16x384xf32>
    %36 = arith.mulf %34, %35 : vector<16x384xf32>
    %37 = arith.addf %16, %36 : vector<16x384xf32>
    %c0_17 = arith.constant 0 : index
    %c0_18 = arith.constant 0 : index
    %c27 = arith.constant 27 : index
    %38 = vector.load %arg1[%c0_17, %c0_18, %c27] : memref<1x1x512xf32, #tpu.memory_space<vmem>>, vector<1x1x384xf32>
    %39 = vector.shape_cast %38 : vector<1x1x384xf32> to vector<1x384xf32>
    %c0_19 = arith.constant 0 : index
    %c5 = arith.constant 5 : index
    %40 = vector.load %arg3[%c0_19, %c5] : memref<16x9xf32, #tpu.memory_space<vmem>>, vector<16x1xf32>
    %41 = vector.broadcast %40 : vector<16x1xf32> to vector<16x384xf32>
    %42 = vector.broadcast %39 : vector<1x384xf32> to vector<16x384xf32>
    %43 = arith.mulf %41, %42 : vector<16x384xf32>
    %44 = arith.addf %23, %43 : vector<16x384xf32>
    %c0_20 = arith.constant 0 : index
    %c0_21 = arith.constant 0 : index
    %c43 = arith.constant 43 : index
    %45 = vector.load %arg1[%c0_20, %c0_21, %c43] : memref<1x1x512xf32, #tpu.memory_space<vmem>>, vector<1x1x384xf32>
    %46 = vector.shape_cast %45 : vector<1x1x384xf32> to vector<1x384xf32>
    %c0_22 = arith.constant 0 : index
    %c6 = arith.constant 6 : index
    %47 = vector.load %arg3[%c0_22, %c6] : memref<16x9xf32, #tpu.memory_space<vmem>>, vector<16x1xf32>
    %48 = vector.broadcast %47 : vector<16x1xf32> to vector<16x384xf32>
    %49 = vector.broadcast %46 : vector<1x384xf32> to vector<16x384xf32>
    %50 = arith.mulf %48, %49 : vector<16x384xf32>
    %51 = arith.addf %30, %50 : vector<16x384xf32>
    %c0_23 = arith.constant 0 : index
    %c0_24 = arith.constant 0 : index
    %c44 = arith.constant 44 : index
    %52 = vector.load %arg1[%c0_23, %c0_24, %c44] : memref<1x1x512xf32, #tpu.memory_space<vmem>>, vector<1x1x384xf32>
    %53 = vector.shape_cast %52 : vector<1x1x384xf32> to vector<1x384xf32>
    %c0_25 = arith.constant 0 : index
    %c7_26 = arith.constant 7 : index
    %54 = vector.load %arg3[%c0_25, %c7_26] : memref<16x9xf32, #tpu.memory_space<vmem>>, vector<16x1xf32>
    %55 = vector.broadcast %54 : vector<16x1xf32> to vector<16x384xf32>
    %56 = vector.broadcast %53 : vector<1x384xf32> to vector<16x384xf32>
    %57 = arith.mulf %55, %56 : vector<16x384xf32>
    %58 = arith.addf %37, %57 : vector<16x384xf32>
    %c0_27 = arith.constant 0 : index
    %c0_28 = arith.constant 0 : index
    %c45 = arith.constant 45 : index
    %59 = vector.load %arg1[%c0_27, %c0_28, %c45] : memref<1x1x512xf32, #tpu.memory_space<vmem>>, vector<1x1x384xf32>
    %60 = vector.shape_cast %59 : vector<1x1x384xf32> to vector<1x384xf32>
    %c0_29 = arith.constant 0 : index
    %c8_30 = arith.constant 8 : index
    %61 = vector.load %arg3[%c0_29, %c8_30] : memref<16x9xf32, #tpu.memory_space<vmem>>, vector<16x1xf32>
    %62 = vector.broadcast %61 : vector<16x1xf32> to vector<16x384xf32>
    %63 = vector.broadcast %60 : vector<1x384xf32> to vector<16x384xf32>
    %64 = arith.mulf %62, %63 : vector<16x384xf32>
    %65 = arith.addf %44, %64 : vector<16x384xf32>
    %66 = arith.addf %51, %58 : vector<16x384xf32>
    %c0_31 = arith.constant 0 : index
    %c0_32 = arith.constant 0 : index
    %67 = vector.load %arg4[%c0_31, %c0_32] : memref<16x1xf32, #tpu.memory_space<vmem>>, vector<16x1xf32>
    %68 = vector.broadcast %67 : vector<16x1xf32> to vector<16x384xf32>
    %69 = arith.addf %65, %68 : vector<16x384xf32>
    %70 = arith.addf %66, %69 : vector<16x384xf32>
    %cst_33 = arith.constant 0.000000e+00 : f32
    %71 = vector.broadcast %cst_33 : f32 to vector<16x384xf32>
    %72 = arith.maximumf %70, %71 : vector<16x384xf32>
    %c0_34 = arith.constant 0 : index
    %c0_35 = arith.constant 0 : index
    %73 = vector.load %arg2[%c0_34, %c0_35] : memref<1x384xf32, #tpu.memory_space<vmem>>, vector<1x384xf32>
    %74 = vector.broadcast %73 : vector<1x384xf32> to vector<16x384xf32>
    %75 = arith.mulf %72, %74 : vector<16x384xf32>
    %c0_36 = arith.constant 0 : index
    %c0_37 = arith.constant 0 : index
    %76 = vector.load %arg8[%c0_36, %c0_37] : memref<16x384xf32, #tpu.memory_space<vmem>>, vector<16x384xf32>
    tpu.vector_store %arg8[%c0_36, %c0_37], %75 {strides = array<i32>} : memref<16x384xf32, #tpu.memory_space<vmem>>, vector<16x384xf32>,
    %cst_38 = arith.constant 0.000000e+00 : f32
    %77 = vector.broadcast %cst_38 : f32 to vector<16x324xf32>
    %cst_39 = arith.constant 0.000000e+00 : f32
    %78 = vector.broadcast %cst_39 : f32 to vector<16x324xf32>
    %cst_40 = arith.constant 0.000000e+00 : f32
    %79 = vector.broadcast %cst_40 : f32 to vector<16x324xf32>
    %c0_41 = arith.constant 0 : index
    %c11 = arith.constant 11 : index
    %80 = vector.load %arg8[%c0_41, %c11] : memref<16x384xf32, #tpu.memory_space<vmem>>, vector<16x324xf32>
    %c0_42 = arith.constant 0 : index
    %c0_43 = arith.constant 0 : index
    %81 = vector.load %arg5[%c0_42, %c0_43] : memref<16x9xf32, #tpu.memory_space<vmem>>, vector<16x1xf32>
    %82 = vector.broadcast %81 : vector<16x1xf32> to vector<16x324xf32>
    %83 = arith.mulf %82, %80 : vector<16x324xf32>
    %84 = arith.addf %77, %83 : vector<16x324xf32>
    %c0_44 = arith.constant 0 : index
    %c12 = arith.constant 12 : index
    %85 = vector.load %arg8[%c0_44, %c12] : memref<16x384xf32, #tpu.memory_space<vmem>>, vector<16x324xf32>
    %c0_45 = arith.constant 0 : index
    %c1_46 = arith.constant 1 : index
    %86 = vector.load %arg5[%c0_45, %c1_46] : memref<16x9xf32, #tpu.memory_space<vmem>>, vector<16x1xf32>
    %87 = vector.broadcast %86 : vector<16x1xf32> to vector<16x324xf32>
    %88 = arith.mulf %87, %85 : vector<16x324xf32>
    %89 = arith.addf %78, %88 : vector<16x324xf32>
    %c0_47 = arith.constant 0 : index
    %c13 = arith.constant 13 : index
    %90 = vector.load %arg8[%c0_47, %c13] : memref<16x384xf32, #tpu.memory_space<vmem>>, vector<16x324xf32>
    %c0_48 = arith.constant 0 : index
    %c2_49 = arith.constant 2 : index
    %91 = vector.load %arg5[%c0_48, %c2_49] : memref<16x9xf32, #tpu.memory_space<vmem>>, vector<16x1xf32>
    %92 = vector.broadcast %91 : vector<16x1xf32> to vector<16x324xf32>
    %93 = arith.mulf %92, %90 : vector<16x324xf32>
    %94 = arith.addf %79, %93 : vector<16x324xf32>
    %c0_50 = arith.constant 0 : index
    %c29 = arith.constant 29 : index
    %95 = vector.load %arg8[%c0_50, %c29] : memref<16x384xf32, #tpu.memory_space<vmem>>, vector<16x324xf32>
    %c0_51 = arith.constant 0 : index
    %c3_52 = arith.constant 3 : index
    %96 = vector.load %arg5[%c0_51, %c3_52] : memref<16x9xf32, #tpu.memory_space<vmem>>, vector<16x1xf32>
    %97 = vector.broadcast %96 : vector<16x1xf32> to vector<16x324xf32>
    %98 = arith.mulf %97, %95 : vector<16x324xf32>
    %99 = arith.addf %84, %98 : vector<16x324xf32>
    %c0_53 = arith.constant 0 : index
    %c30 = arith.constant 30 : index
    %100 = vector.load %arg8[%c0_53, %c30] : memref<16x384xf32, #tpu.memory_space<vmem>>, vector<16x324xf32>
    %c0_54 = arith.constant 0 : index
    %c4_55 = arith.constant 4 : index
    %101 = vector.load %arg5[%c0_54, %c4_55] : memref<16x9xf32, #tpu.memory_space<vmem>>, vector<16x1xf32>
    %102 = vector.broadcast %101 : vector<16x1xf32> to vector<16x324xf32>
    %103 = arith.mulf %102, %100 : vector<16x324xf32>
    %104 = arith.addf %89, %103 : vector<16x324xf32>
    %c0_56 = arith.constant 0 : index
    %c31 = arith.constant 31 : index
    %105 = vector.load %arg8[%c0_56, %c31] : memref<16x384xf32, #tpu.memory_space<vmem>>, vector<16x324xf32>
    %c0_57 = arith.constant 0 : index
    %c5_58 = arith.constant 5 : index
    %106 = vector.load %arg5[%c0_57, %c5_58] : memref<16x9xf32, #tpu.memory_space<vmem>>, vector<16x1xf32>
    %107 = vector.broadcast %106 : vector<16x1xf32> to vector<16x324xf32>
    %108 = arith.mulf %107, %105 : vector<16x324xf32>
    %109 = arith.addf %94, %108 : vector<16x324xf32>
    %c0_59 = arith.constant 0 : index
    %c47 = arith.constant 47 : index
    %110 = vector.load %arg8[%c0_59, %c47] : memref<16x384xf32, #tpu.memory_space<vmem>>, vector<16x324xf32>
    %c0_60 = arith.constant 0 : index
    %c6_61 = arith.constant 6 : index
    %111 = vector.load %arg5[%c0_60, %c6_61] : memref<16x9xf32, #tpu.memory_space<vmem>>, vector<16x1xf32>
    %112 = vector.broadcast %111 : vector<16x1xf32> to vector<16x324xf32>
    %113 = arith.mulf %112, %110 : vector<16x324xf32>
    %114 = arith.addf %99, %113 : vector<16x324xf32>
    %c0_62 = arith.constant 0 : index
    %c48 = arith.constant 48 : index
    %115 = vector.load %arg8[%c0_62, %c48] : memref<16x384xf32, #tpu.memory_space<vmem>>, vector<16x324xf32>
    %c0_63 = arith.constant 0 : index
    %c7_64 = arith.constant 7 : index
    %116 = vector.load %arg5[%c0_63, %c7_64] : memref<16x9xf32, #tpu.memory_space<vmem>>, vector<16x1xf32>
    %117 = vector.broadcast %116 : vector<16x1xf32> to vector<16x324xf32>
    %118 = arith.mulf %117, %115 : vector<16x324xf32>
    %119 = arith.addf %104, %118 : vector<16x324xf32>
    %c0_65 = arith.constant 0 : index
    %c49 = arith.constant 49 : index
    %120 = vector.load %arg8[%c0_65, %c49] : memref<16x384xf32, #tpu.memory_space<vmem>>, vector<16x324xf32>
    %c0_66 = arith.constant 0 : index
    %c8_67 = arith.constant 8 : index
    %121 = vector.load %arg5[%c0_66, %c8_67] : memref<16x9xf32, #tpu.memory_space<vmem>>, vector<16x1xf32>
    %122 = vector.broadcast %121 : vector<16x1xf32> to vector<16x324xf32>
    %123 = arith.mulf %122, %120 : vector<16x324xf32>
    %124 = arith.addf %109, %123 : vector<16x324xf32>
    %125 = arith.addf %114, %119 : vector<16x324xf32>
    %126 = arith.addf %125, %124 : vector<16x324xf32>
    %cst_68 = arith.constant dense<0.000000e+00> : vector<324xf32>
    %127 = vector.multi_reduction <add>, %126, %cst_68 [0] : vector<16x324xf32> to vector<324xf32>
    %128 = vector.shape_cast %127 : vector<324xf32> to vector<1x324xf32>
    %c0_69 = arith.constant 0 : index
    %129 = memref.load %arg6[%c0_69] : memref<1xf32, #tpu.memory_space<smem>>
    %130 = vector.broadcast %129 : f32 to vector<1x324xf32>
    %131 = arith.addf %128, %130 : vector<1x324xf32>
    %c0_70 = arith.constant 0 : index
    %c0_71 = arith.constant 0 : index
    %c0_72 = arith.constant 0 : index
    %132 = vector.load %arg7[%c0_70, %c0_71, %c0_72] : memref<1x1x324xf32, #tpu.memory_space<vmem>>, vector<1x1x324xf32>
    %133 = vector.shape_cast %132 : vector<1x1x324xf32> to vector<1x324xf32>
    %134 = vector.shape_cast %131 : vector<1x324xf32> to vector<1x1x324xf32>
    tpu.vector_store %arg7[%c0_70, %c0_71, %c0_72], %134 {strides = array<i32>} : memref<1x1x324xf32, #tpu.memory_space<vmem>>, vector<1x1x324xf32>,
    return
  }
  func.func @transform_0(%arg0: i32) -> (i32, i32, i32) {
    %c0_i32 = arith.constant 0 : i32
    %c0_i32_0 = arith.constant 0 : i32
    %c0_i32_1 = arith.constant 0 : i32
    return %arg0, %c0_i32, %c0_i32_0 : i32, i32, i32
  }
  func.func @transform_1(%arg0: i32) -> (i32, i32) {
    %c0_i32 = arith.constant 0 : i32
    %c0_i32_0 = arith.constant 0 : i32
    %c0_i32_1 = arith.constant 0 : i32
    return %c0_i32, %c0_i32_0 : i32, i32
  }
  func.func @transform_2(%arg0: i32) -> (i32, i32) {
    %c0_i32 = arith.constant 0 : i32
    %c0_i32_0 = arith.constant 0 : i32
    %c0_i32_1 = arith.constant 0 : i32
    return %c0_i32, %c0_i32_0 : i32, i32
  }
  func.func @transform_3(%arg0: i32) -> (i32, i32) {
    %c0_i32 = arith.constant 0 : i32
    %c0_i32_0 = arith.constant 0 : i32
    %c0_i32_1 = arith.constant 0 : i32
    return %c0_i32, %c0_i32_0 : i32, i32
  }
  func.func @transform_4(%arg0: i32) -> (i32, i32) {
    %c0_i32 = arith.constant 0 : i32
    %c0_i32_0 = arith.constant 0 : i32
    %c0_i32_1 = arith.constant 0 : i32
    return %c0_i32, %c0_i32_0 : i32, i32
  }
  func.func @transform_5(%arg0: i32) -> i32 {
    %c0_i32 = arith.constant 0 : i32
    %c0_i32_0 = arith.constant 0 : i32
    return %c0_i32 : i32
  }
  func.func @transform_6(%arg0: i32) -> (i32, i32, i32) {
    %c0_i32 = arith.constant 0 : i32
    %c0_i32_0 = arith.constant 0 : i32
    %c0_i32_1 = arith.constant 0 : i32
    return %arg0, %c0_i32, %c0_i32_0 : i32, i32, i32
  }
}

</mosaic_0001>

<llo_original>
// kernel: tpu_custom_call.1
$region0: #{tpu_custom_call.1}
  #allocation0 [shape = 'u32[]', space=smem, size = 0x4, offset = 0x4, fixed_abs, tag = 'smem constant byte address 0x4 - core index']
  #allocation1 [shape = 'u32[72,128]{1,0:T(1,128)}', space=vmem, size = 0x9000, scoped, tag = 'internal scratch']
  #allocation2 [shape = 'f32[16,384]{1,0:T(8,128)}', space=vmem, size = 0x6000, scoped, tag = 'scratch operand']
  #allocation3 [shape = 'f32[1]{0:T(128)S(6)}', space=smem, size = 0x200, scoped, tag = 'scoped memory for tpu_custom_call.1']
  %s0 = inlined_call_operand.hbm [shape: f32[2,1,512], index: 0, kind: input, shape index: {}]
  %s1 = inlined_call_operand.hbm [shape: f32[1,384], index: 1, kind: input, shape index: {}]
  %s2 = inlined_call_operand.vmem [shape: f32[16,9], index: 2, kind: input, shape index: {}]
  %s3 = inlined_call_operand.vmem [shape: f32[16,1], index: 3, kind: input, shape index: {}]
  %s4 = inlined_call_operand.hbm [shape: f32[16,9], index: 4, kind: input, shape index: {}]
  %s5 = inlined_call_operand.<no memory space> [shape: f32[1], index: 5, kind: input, shape index: {}]
  %s6 = inlined_call_operand.hbm [shape: f32[2,1,324], index: 6, kind: output, shape index: {}]
  %s7 = sld [smem:[#allocation0]]
  $region69: #{tpu_custom_call.1} parent=0
    _
  %s9 = ssub.s32 1, %s7
  %s10 = scalar_select 0, %s9, %s7
  %11 = sst [smem:[#allocation3]] %s5
  $region1: #{tpu_custom_call.1} parent=0
    #allocation4 [shape = 'u8[4096]{0}', space=vmem, size = 0x1000, scoped, tag = 'input window, operand 0']
    #allocation5 [shape = 's32[2]{0}', space=sflag, size = 0x8, scoped, tag = 'scoped memory for tpu_custom_call.1']
    #allocation6 [shape = 's32[2]{0}', space=sflag, size = 0x8, scoped, tag = 'scoped memory for tpu_custom_call.1']
    #allocation7 [shape = 'u8[1536]{0}', space=vmem, size = 0x800, scoped, tag = 'input window, operand 1, single buffered']
    #allocation8 [shape = 's32[1]{0}', space=sflag, size = 0x4, scoped, tag = 'scoped memory for tpu_custom_call.1']
    #allocation9 [shape = 'u8[8192]{0}', space=vmem, size = 0x2000, scoped, tag = 'input window, operand 4, single buffered']
    #allocation10 [shape = 'u8[3072]{0}', space=vmem, size = 0xc00, scoped, tag = 'output window, operand 0']
    %12 = vsyncpa [#allocation5], 0
    %s13 = scalar_lea.sflag [#allocation5], 1
    %14 = vsyncpa %s13, 0
    %15 = vsyncpa [#allocation8], 0
    %16 = vsyncpa [#allocation6], 0
    %s17 = scalar_lea.sflag [#allocation6], 1
    %18 = vsyncpa %s17, 0
    loop: start=0, step=1, limit=4
    $region2: #{tpu_custom_call.1} parent=1 // loop_pre_header
      _
    $region3: #{tpu_custom_call.1} parent=1 // loop_header
      %s20 = sphi 0, %s24
      %p21 = scmp.ge.s32.totalorder %s20, 4
      %s30 = sphi 0, %s32
      %s33 = sphi 0, %s30
      %s34 = sphi 0, %s33
      %s50 = sphi 0, %s34
      %s54 = sphi 0, %s54
      %s56 = sphi 0, %s54
      %s57 = sphi 0, %s56
      %s71 = sphi 0, %s57
      %s75 = sphi 0, %s75
      %s77 = sphi 0, %s75
      %s78 = sphi 0, %s77
      %s92 = sphi 0, %s78
      %s96 = sphi 0, %s96
      %s98 = sphi 0, %s96
      %s99 = sphi 0, %s98
      %s113 = sphi 0, %s99
      %s117 = sphi 0, %s117
      %s119 = sphi 0, %s117
      %s120 = sphi 0, %s119
      %s134 = sphi 0, %s120
      %s138 = sphi 0, %s138
      %s140 = sphi 0, %s138
      %s141 = sphi 0, %s140
      %s155 = sphi 0, %s141
      %s161 = sphi 0, %s163
      %s164 = sphi 0, %s161
      %s165 = sphi 0, %s164
      %s181 = sphi 0, %s165
    $region4: #{tpu_custom_call.1} parent=1 // loop_header_branch
      %23 = sbr.rel (%p21) target = $region8
    $region5: #{tpu_custom_call.1} parent=1 // loop_body
      %s25 = ssub.s32 %s20, 1
      %s26 = ssub.s32 %s20, 2
      %s27 = sadd.s32 %s20, 1
      %s28 = ssub.s32 %s20, %s27
      %p29 = scmp.eq.s32.totalorder %s28, 0
      %s31 = sadd.s32 %s30, 1
      %s32 = scalar_select %p29, %s30, %s31
      %p35 = pneg %p29
      %p36 = scmp.eq.s32.totalorder %s20, 1
      %p37 = por %p35, %p36
      %p38 = scmp.ne.s32.totalorder %s30, %s33
      %p39 = scmp.eq.s32.totalorder %s20, 0
      %p40 = por %p38, %p39
      %p41 = scmp.ne.s32.totalorder %s30, %s33
      %p42 = scmp.eq.s32.totalorder %s25, 1
      %p43 = por %p41, %p42
      %p44 = scmp.ne.s32.totalorder %s33, %s34
      %p45 = scmp.eq.s32.totalorder %s25, 0
      %p46 = por %p44, %p45
      %p47 = scmp.ne.s32.totalorder %s33, %s34
      %p48 = scmp.eq.s32.totalorder %s26, 1
      %p49 = por %p47, %p48
      %p51 = scmp.ne.s32.totalorder %s34, %s50
      %p52 = scmp.eq.s32.totalorder %s26, 0
      %p53 = por %p51, %p52
      %s55 = sadd.s32 %s54, 1
      %p58 = scmp.eq.s32.totalorder %s20, 1
      %p59 = scmp.ne.s32.totalorder %s54, %s56
      %p60 = scmp.eq.s32.totalorder %s20, 0
      %p61 = por %p59, %p60
      %p62 = scmp.ne.s32.totalorder %s54, %s56
      %p63 = scmp.eq.s32.totalorder %s25, 1
      %p64 = por %p62, %p63
      %p65 = scmp.ne.s32.totalorder %s56, %s57
      %p66 = scmp.eq.s32.totalorder %s25, 0
      %p67 = por %p65, %p66
      %p68 = scmp.ne.s32.totalorder %s56, %s57
      %p69 = scmp.eq.s32.totalorder %s26, 1
      %p70 = por %p68, %p69
      %p72 = scmp.ne.s32.totalorder %s57, %s71
      %p73 = scmp.eq.s32.totalorder %s26, 0
      %p74 = por %p72, %p73
      %s76 = sadd.s32 %s75, 1
      %p79 = scmp.eq.s32.totalorder %s20, 1
      %p80 = scmp.ne.s32.totalorder %s75, %s77
      %p81 = scmp.eq.s32.totalorder %s20, 0
      %p82 = por %p80, %p81
      %p83 = scmp.ne.s32.totalorder %s75, %s77
      %p84 = scmp.eq.s32.totalorder %s25, 1
      %p85 = por %p83, %p84
      %p86 = scmp.ne.s32.totalorder %s77, %s78
      %p87 = scmp.eq.s32.totalorder %s25, 0
      %p88 = por %p86, %p87
      %p89 = scmp.ne.s32.totalorder %s77, %s78
      %p90 = scmp.eq.s32.totalorder %s26, 1
      %p91 = por %p89, %p90
      %p93 = scmp.ne.s32.totalorder %s78, %s92
      %p94 = scmp.eq.s32.totalorder %s26, 0
      %p95 = por %p93, %p94
      %s97 = sadd.s32 %s96, 1
      %p100 = scmp.eq.s32.totalorder %s20, 1
      %p101 = scmp.ne.s32.totalorder %s96, %s98
      %p102 = scmp.eq.s32.totalorder %s20, 0
      %p103 = por %p101, %p102
      %p104 = scmp.ne.s32.totalorder %s96, %s98
      %p105 = scmp.eq.s32.totalorder %s25, 1
      %p106 = por %p104, %p105
      %p107 = scmp.ne.s32.totalorder %s98, %s99
      %p108 = scmp.eq.s32.totalorder %s25, 0
      %p109 = por %p107, %p108
      %p110 = scmp.ne.s32.totalorder %s98, %s99
      %p111 = scmp.eq.s32.totalorder %s26, 1
      %p112 = por %p110, %p111
      %p114 = scmp.ne.s32.totalorder %s99, %s113
      %p115 = scmp.eq.s32.totalorder %s26, 0
      %p116 = por %p114, %p115
      %s118 = sadd.s32 %s117, 1
      %p121 = scmp.eq.s32.totalorder %s20, 1
      %p122 = scmp.ne.s32.totalorder %s117, %s119
      %p123 = scmp.eq.s32.totalorder %s20, 0
      %p124 = por %p122, %p123
      %p125 = scmp.ne.s32.totalorder %s117, %s119
      %p126 = scmp.eq.s32.totalorder %s25, 1
      %p127 = por %p125, %p126
      %p128 = scmp.ne.s32.totalorder %s119, %s120
      %p129 = scmp.eq.s32.totalorder %s25, 0
      %p130 = por %p128, %p129
      %p131 = scmp.ne.s32.totalorder %s119, %s120
      %p132 = scmp.eq.s32.totalorder %s26, 1
      %p133 = por %p131, %p132
      %p135 = scmp.ne.s32.totalorder %s120, %s134
      %p136 = scmp.eq.s32.totalorder %s26, 0
      %p137 = por %p135, %p136
      %s139 = sadd.s32 %s138, 1
      %p142 = scmp.eq.s32.totalorder %s20, 1
      %p143 = scmp.ne.s32.totalorder %s138, %s140
      %p144 = scmp.eq.s32.totalorder %s20, 0
      %p145 = por %p143, %p144
      %p146 = scmp.ne.s32.totalorder %s138, %s140
      %p147 = scmp.eq.s32.totalorder %s25, 1
      %p148 = por %p146, %p147
      %p149 = scmp.ne.s32.totalorder %s140, %s141
      %p150 = scmp.eq.s32.totalorder %s25, 0
      %p151 = por %p149, %p150
      %p152 = scmp.ne.s32.totalorder %s140, %s141
      %p153 = scmp.eq.s32.totalorder %s26, 1
      %p154 = por %p152, %p153
      %p156 = scmp.ne.s32.totalorder %s141, %s155
      %p157 = scmp.eq.s32.totalorder %s26, 0
      %p158 = por %p156, %p157
      %s159 = ssub.s32 %s20, %s27
      %p160 = scmp.eq.s32.totalorder %s159, 0
      %s162 = sadd.s32 %s161, 1
      %s163 = scalar_select %p160, %s161, %s162
      %p166 = pneg %p160
      %p167 = scmp.eq.s32.totalorder %s20, 1
      %p168 = por %p166, %p167
      %p169 = scmp.ne.s32.totalorder %s161, %s164
      %p170 = scmp.eq.s32.totalorder %s20, 0
      %p171 = por %p169, %p170
      %p172 = scmp.ne.s32.totalorder %s161, %s164
      %p173 = scmp.eq.s32.totalorder %s25, 1
      %p174 = por %p172, %p173
      %p175 = scmp.ne.s32.totalorder %s164, %s165
      %p176 = scmp.eq.s32.totalorder %s25, 0
      %p177 = por %p175, %p176
      %p178 = scmp.ne.s32.totalorder %s164, %s165
      %p179 = scmp.eq.s32.totalorder %s26, 1
      %p180 = por %p178, %p179
      %p182 = scmp.ne.s32.totalorder %s165, %s181
      %p183 = scmp.eq.s32.totalorder %s26, 0
      %p184 = por %p182, %p183
      %p185 = scmp.le.s32.totalorder 1, %s20
      %p186 = scmp.lt.s32.totalorder %s20, 3
      %p187 = pnand %p185, %p186
      %p188 = pneg %p187
      // Predicated region
      $region9: #{tpu_custom_call.1} parent=5 // pred_check
        _
      $region10: #{tpu_custom_call.1} parent=5 // pred_check_branch
        %190 = sbr.rel (%p187) target = $region12
      $region11: #{tpu_custom_call.1} parent=5 // pred_region
        %s191 = ssub.s32 %s20, 1
        // Predicated region
        $region13: #{tpu_custom_call.1} parent=11 // pred_check
          %p192 = pneg %p67
        $region14: #{tpu_custom_call.1} parent=11 // pred_check_branch
          %194 = sbr.rel (%p192) target = $region16
        $region15: #{tpu_custom_call.1} parent=11 // pred_region
          %196 = vsyncadd [#allocation8], 0
          %s198 = sshll.u32 %s1, 4
          %s199 = int_to_ptr.hbm [resolvable:$true] %s198
          %s200 = sshll.u32 [#allocation7], 4
          %s201 = int_to_ptr.vmem [resolvable:$true] %s200
          %203 = dma.hbm_to_vmem [thread:$0]  %s199, 48, %s201, [#allocation8]
        $region16: #{tpu_custom_call.1} parent=11 // pred_fallthru
          _
        // Predicated region
        $region17: #{tpu_custom_call.1} parent=11 // pred_check
          %p204 = pneg %p88
        $region18: #{tpu_custom_call.1} parent=11 // pred_check_branch
          %206 = sbr.rel (%p204) target = $region20
        $region19: #{tpu_custom_call.1} parent=11 // pred_region
          _
        $region20: #{tpu_custom_call.1} parent=11 // pred_fallthru
          _
        // Predicated region
        $region21: #{tpu_custom_call.1} parent=11 // pred_check
          %p207 = pneg %p109
        $region22: #{tpu_custom_call.1} parent=11 // pred_check_branch
          %209 = sbr.rel (%p207) target = $region24
        $region23: #{tpu_custom_call.1} parent=11 // pred_region
          _
        $region24: #{tpu_custom_call.1} parent=11 // pred_fallthru
          _
        // Predicated region
        $region25: #{tpu_custom_call.1} parent=11 // pred_check
          %p210 = pneg %p130
        $region26: #{tpu_custom_call.1} parent=11 // pred_check_branch
          %212 = sbr.rel (%p210) target = $region28
        $region27: #{tpu_custom_call.1} parent=11 // pred_region
          %214 = vsyncadd [#allocation8], 0
          %s215 = sshll.u32 %s4, 4
          %s216 = int_to_ptr.hbm [resolvable:$true] %s215
          %s217 = sshll.u32 [#allocation9], 4
          %s218 = int_to_ptr.vmem [resolvable:$true] %s217
          %223 = dma.hbm_to_vmem [thread:$0]  %s216, 256, %s218, [#allocation8], 128, 128, 8
        $region28: #{tpu_custom_call.1} parent=11 // pred_fallthru
          _
        // Predicated region
        $region29: #{tpu_custom_call.1} parent=11 // pred_check
          %p224 = pneg %p151
        $region30: #{tpu_custom_call.1} parent=11 // pred_check_branch
          %226 = sbr.rel (%p224) target = $region32
        $region31: #{tpu_custom_call.1} parent=11 // pred_region
          _
        $region32: #{tpu_custom_call.1} parent=11 // pred_fallthru
          _
      $region12: #{tpu_custom_call.1} parent=5 // pred_fallthru
        _
      %p227 = scmp.lt.s32.totalorder %s20, 2
      // Predicated region
      $region33: #{tpu_custom_call.1} parent=5 // pred_check
        %p228 = pneg %p227
      $region34: #{tpu_custom_call.1} parent=5 // pred_check_branch
        %230 = sbr.rel (%p228) target = $region36
      $region35: #{tpu_custom_call.1} parent=5 // pred_region
        // Predicated region
        $region37: #{tpu_custom_call.1} parent=35 // pred_check
          %p231 = pneg %p40
        $region38: #{tpu_custom_call.1} parent=35 // pred_check_branch
          %233 = sbr.rel (%p231) target = $region40
        $region39: #{tpu_custom_call.1} parent=35 // pred_region
          %s234 = sand.u32 %s30, 1
          %s235 = scalar_lea.sflag [#allocation5], %s234
          %s236 = sand.u32 %s30, 1
          %s237 = smul.addr %s236, 4
          %s238 = scalar_lea.vmem [#allocation4], %s237
          %240 = vsyncadd %s235, 0
          %s241 = smul.addr %s20, 4
          %s242 = scalar_lea.hbm %s0, %s241
          %s244 = sshll.u32 %s242, 4
          %s245 = int_to_ptr.hbm [resolvable:$true] %s244
          %s246 = sshll.u32 %s238, 4
          %s247 = int_to_ptr.vmem [resolvable:$true] %s246
          %249 = dma.hbm_to_vmem [thread:$0]  %s245, 64, %s247, %s235
        $region40: #{tpu_custom_call.1} parent=35 // pred_fallthru
          _
      $region36: #{tpu_custom_call.1} parent=5 // pred_fallthru
        _
      %p250 = scmp.le.s32.totalorder 1, %s20
      %p251 = scmp.lt.s32.totalorder %s20, 3
      %p252 = pnand %p250, %p251
      %p253 = pneg %p252
      // Predicated region
      $region41: #{tpu_custom_call.1} parent=5 // pred_check
        _
      $region42: #{tpu_custom_call.1} parent=5 // pred_check_branch
        %255 = sbr.rel (%p252) target = $region44
      $region43: #{tpu_custom_call.1} parent=5 // pred_region
        %s256 = ssub.s32 %s20, 1
        %s257 = sand.u32 %s33, 1
        %s258 = scalar_lea.sflag [#allocation5], %s257
        %s259 = sand.u32 %s33, 1
        %s260 = smul.addr %s259, 4
        %s261 = scalar_lea.vmem [#allocation4], %s260
        // Predicated region
        $region45: #{tpu_custom_call.1} parent=43 // pred_check
          %p262 = pneg %p46
        $region46: #{tpu_custom_call.1} parent=43 // pred_check_branch
          %264 = sbr.rel (%p262) target = $region48
        $region47: #{tpu_custom_call.1} parent=43 // pred_region
          %266 = dma.done %s258, 64
        $region48: #{tpu_custom_call.1} parent=43 // pred_fallthru
          _
        // Predicated region
        $region49: #{tpu_custom_call.1} parent=43 // pred_check
          %p267 = pneg %p67
        $region50: #{tpu_custom_call.1} parent=43 // pred_check_branch
          %269 = sbr.rel (%p267) target = $region52
        $region51: #{tpu_custom_call.1} parent=43 // pred_region
          %271 = dma.done [#allocation8], 48
        $region52: #{tpu_custom_call.1} parent=43 // pred_fallthru
          _
        // Predicated region
        $region53: #{tpu_custom_call.1} parent=43 // pred_check
          %p272 = pneg %p130
        $region54: #{tpu_custom_call.1} parent=43 // pred_check_branch
          %274 = sbr.rel (%p272) target = $region56
        $region55: #{tpu_custom_call.1} parent=43 // pred_region
          %276 = dma.done [#allocation8], 256
        $region56: #{tpu_custom_call.1} parent=43 // pred_fallthru
          _
        %s277 = sand.u32 %s33, 1
        %s278 = scalar_lea.sflag [#allocation5], %s277
        %s279 = sand.u32 %s33, 1
        %s280 = smul.addr %s279, 4
        %s281 = scalar_lea.vmem [#allocation4], %s280
        %p282 = pneg %p46
        %p283 = pneg %p43
        %p284 = pneg %p67
        %p285 = pneg %p64
        %p286 = pneg %p88
        %p287 = pneg %p85
        %p288 = pneg %p109
        %p289 = pneg %p106
        %p290 = pneg %p130
        %p291 = pneg %p127
        %p292 = pneg %p151
        %p293 = pneg %p148
        %p294 = pneg %p177
        %p295 = pneg %p174
        %s296 = sand.u32 %s164, 1
        %s297 = scalar_lea.sflag [#allocation6], %s296
        %s298 = sand.u32 %s164, 1
        %s299 = smul.addr %s298, 3
        %s300 = scalar_lea.vmem [#allocation10], %s299
        %v301 = vld [vmem:[%s261] sm:$0xf]
        %v302 = vld [vmem:[%s2] sm:$0xff]
        %v303 = vld [vmem:[%s2 + $0x8] sm:$0xff]
        %305 = vset.pattern.permute.xlu0 0
        %306 = vperm.xlu0 %305, %v302
        %v307 = vpop.permute.xlu0 %306
        %310 = vset.pattern.permute.xlu0 0
        %311 = vperm.xlu0 %310, %v303
        %v312 = vpop.permute.xlu0 %311
        %v315 = vperm.slane %v301, 0
        %v316 = vperm.slane %v301, 1
        %v317 = vperm.slane %v301, 2
        %v318 = vperm.slane %v301, 3
        %v323 = vmul.f32 %v307, %v315
        %v324 = vmul.f32 %v307, %v316
        %v325 = vmul.f32 %v307, %v317
        %v326 = vmul.f32 %v307, %v318
        %v327 = vmul.f32 %v312, %v315
        %v328 = vmul.f32 %v312, %v316
        %v329 = vmul.f32 %v312, %v317
        %v330 = vmul.f32 %v312, %v318
        %v331 = vadd.f32 %v323, 0.0
        %v332 = vadd.f32 %v324, 0.0
        %v333 = vadd.f32 %v325, 0.0
        %v334 = vadd.f32 %v326, 0.0
        %v335 = vadd.f32 %v327, 0.0
        %v336 = vadd.f32 %v328, 0.0
        %v337 = vadd.f32 %v329, 0.0
        %v338 = vadd.f32 %v330, 0.0
        %339 = vset.pattern.permute.xlu0 1
        %340 = vperm.xlu0 %339, %v302
        %v341 = vpop.permute.xlu0 %340
        %343 = vset.pattern.permute.xlu0 1
        %344 = vperm.xlu0 %343, %v303
        %v345 = vpop.permute.xlu0 %344
        %v347 = vmul.f32 %v341, %v315
        %v348 = vmul.f32 %v341, %v316
        %v349 = vmul.f32 %v341, %v317
        %v350 = vmul.f32 %v341, %v318
        %v351 = vmul.f32 %v345, %v315
        %v352 = vmul.f32 %v345, %v316
        %v353 = vmul.f32 %v345, %v317
        %v354 = vmul.f32 %v345, %v318
        %v355 = vadd.f32 %v347, 0.0
        %v356 = vadd.f32 %v348, 0.0
        %v357 = vadd.f32 %v349, 0.0
        %v358 = vadd.f32 %v350, 0.0
        %v359 = vadd.f32 %v351, 0.0
        %v360 = vadd.f32 %v352, 0.0
        %v361 = vadd.f32 %v353, 0.0
        %v362 = vadd.f32 %v354, 0.0
        %363 = vset.pattern.permute.xlu0 2
        %364 = vperm.xlu0 %363, %v302
        %v365 = vpop.permute.xlu0 %364
        %367 = vset.pattern.permute.xlu0 2
        %368 = vperm.xlu0 %367, %v303
        %v369 = vpop.permute.xlu0 %368
        %v371 = vmul.f32 %v365, %v315
        %v372 = vmul.f32 %v365, %v316
        %v373 = vmul.f32 %v365, %v317
        %v374 = vmul.f32 %v365, %v318
        %v375 = vmul.f32 %v369, %v315
        %v376 = vmul.f32 %v369, %v316
        %v377 = vmul.f32 %v369, %v317
        %v378 = vmul.f32 %v369, %v318
        %v379 = vadd.f32 %v371, 0.0
        %v380 = vadd.f32 %v372, 0.0
        %v381 = vadd.f32 %v373, 0.0
        %v382 = vadd.f32 %v374, 0.0
        %v383 = vadd.f32 %v375, 0.0
        %v384 = vadd.f32 %v376, 0.0
        %v385 = vadd.f32 %v377, 0.0
        %v386 = vadd.f32 %v378, 0.0
        %387 = vset.pattern.permute.xlu0 3
        %388 = vperm.xlu0 %387, %v302
        %v389 = vpop.permute.xlu0 %388
        %391 = vset.pattern.permute.xlu0 3
        %392 = vperm.xlu0 %391, %v303
        %v393 = vpop.permute.xlu0 %392
        %v395 = vmul.f32 %v389, %v315
        %v396 = vmul.f32 %v389, %v316
        %v397 = vmul.f32 %v389, %v317
        %v398 = vmul.f32 %v389, %v318
        %v399 = vmul.f32 %v393, %v315
        %v400 = vmul.f32 %v393, %v316
        %v401 = vmul.f32 %v393, %v317
        %v402 = vmul.f32 %v393, %v318
        %411 = vrot.lane.b32.xlu0 %v395, 110
        %v412 = vpop.permute.xlu0 %411
        %413 = vrot.lane.b32.xlu0 %v396, 110
        %v414 = vpop.permute.xlu0 %413
        %415 = vrot.lane.b32.xlu0 %v397, 110
        %v416 = vpop.permute.xlu0 %415
        %417 = vrot.lane.b32.xlu0 %v398, 110
        %v418 = vpop.permute.xlu0 %417
        %419 = vrot.lane.b32.xlu0 %v399, 110
        %v420 = vpop.permute.xlu0 %419
        %421 = vrot.lane.b32.xlu0 %v400, 110
        %v422 = vpop.permute.xlu0 %421
        %423 = vrot.lane.b32.xlu0 %v401, 110
        %v424 = vpop.permute.xlu0 %423
        %425 = vrot.lane.b32.xlu0 %v402, 110
        %v426 = vpop.permute.xlu0 %425
        %vm427 = vcmask 900096
        %v428 = vsel %vm427, %v412, %v414
        %v429 = vsel %vm427, %v414, %v416
        %v430 = vsel %vm427, %v416, %v418
        %v431 = vsel %vm427, %v420, %v422
        %v432 = vsel %vm427, %v422, %v424
        %v433 = vsel %vm427, %v424, %v426
        %v442 = vadd.f32 %v331, %v428
        %v443 = vadd.f32 %v332, %v429
        %v444 = vadd.f32 %v333, %v430
        %v445 = vadd.f32 %v334, %v418
        %v446 = vadd.f32 %v335, %v431
        %v447 = vadd.f32 %v336, %v432
        %v448 = vadd.f32 %v337, %v433
        %v449 = vadd.f32 %v338, %v426
        %450 = vset.pattern.permute.xlu0 4
        %451 = vperm.xlu0 %450, %v302
        %v452 = vpop.permute.xlu0 %451
        %454 = vset.pattern.permute.xlu0 4
        %455 = vperm.xlu0 %454, %v303
        %v456 = vpop.permute.xlu0 %455
        %v458 = vmul.f32 %v452, %v315
        %v459 = vmul.f32 %v452, %v316
        %v460 = vmul.f32 %v452, %v317
        %v461 = vmul.f32 %v452, %v318
        %v462 = vmul.f32 %v456, %v315
        %v463 = vmul.f32 %v456, %v316
        %v464 = vmul.f32 %v456, %v317
        %v465 = vmul.f32 %v456, %v318
        %474 = vrot.lane.b32.xlu0 %v458, 110
        %v475 = vpop.permute.xlu0 %474
        %476 = vrot.lane.b32.xlu0 %v459, 110
        %v477 = vpop.permute.xlu0 %476
        %478 = vrot.lane.b32.xlu0 %v460, 110
        %v479 = vpop.permute.xlu0 %478
        %480 = vrot.lane.b32.xlu0 %v461, 110
        %v481 = vpop.permute.xlu0 %480
        %482 = vrot.lane.b32.xlu0 %v462, 110
        %v483 = vpop.permute.xlu0 %482
        %484 = vrot.lane.b32.xlu0 %v463, 110
        %v485 = vpop.permute.xlu0 %484
        %486 = vrot.lane.b32.xlu0 %v464, 110
        %v487 = vpop.permute.xlu0 %486
        %488 = vrot.lane.b32.xlu0 %v465, 110
        %v489 = vpop.permute.xlu0 %488
        %v490 = vsel %vm427, %v475, %v477
        %v491 = vsel %vm427, %v477, %v479
        %v492 = vsel %vm427, %v479, %v481
        %v493 = vsel %vm427, %v483, %v485
        %v494 = vsel %vm427, %v485, %v487
        %v495 = vsel %vm427, %v487, %v489
        %v504 = vadd.f32 %v355, %v490
        %v505 = vadd.f32 %v356, %v491
        %v506 = vadd.f32 %v357, %v492
        %v507 = vadd.f32 %v358, %v481
        %v508 = vadd.f32 %v359, %v493
        %v509 = vadd.f32 %v360, %v494
        %v510 = vadd.f32 %v361, %v495
        %v511 = vadd.f32 %v362, %v489
        %512 = vset.pattern.permute.xlu0 5
        %513 = vperm.xlu0 %512, %v302
        %v514 = vpop.permute.xlu0 %513
        %516 = vset.pattern.permute.xlu0 5
        %517 = vperm.xlu0 %516, %v303
        %v518 = vpop.permute.xlu0 %517
        %v520 = vmul.f32 %v514, %v315
        %v521 = vmul.f32 %v514, %v316
        %v522 = vmul.f32 %v514, %v317
        %v523 = vmul.f32 %v514, %v318
        %v524 = vmul.f32 %v518, %v315
        %v525 = vmul.f32 %v518, %v316
        %v526 = vmul.f32 %v518, %v317
        %v527 = vmul.f32 %v518, %v318
        %536 = vrot.lane.b32.xlu0 %v520, 110
        %v537 = vpop.permute.xlu0 %536
        %538 = vrot.lane.b32.xlu0 %v521, 110
        %v539 = vpop.permute.xlu0 %538
        %540 = vrot.lane.b32.xlu0 %v522, 110
        %v541 = vpop.permute.xlu0 %540
        %542 = vrot.lane.b32.xlu0 %v523, 110
        %v543 = vpop.permute.xlu0 %542
        %544 = vrot.lane.b32.xlu0 %v524, 110
        %v545 = vpop.permute.xlu0 %544
        %546 = vrot.lane.b32.xlu0 %v525, 110
        %v547 = vpop.permute.xlu0 %546
        %548 = vrot.lane.b32.xlu0 %v526, 110
        %v549 = vpop.permute.xlu0 %548
        %550 = vrot.lane.b32.xlu0 %v527, 110
        %v551 = vpop.permute.xlu0 %550
        %v552 = vsel %vm427, %v537, %v539
        %v553 = vsel %vm427, %v539, %v541
        %v554 = vsel %vm427, %v541, %v543
        %v555 = vsel %vm427, %v545, %v547
        %v556 = vsel %vm427, %v547, %v549
        %v557 = vsel %vm427, %v549, %v551
        %v566 = vadd.f32 %v379, %v552
        %v567 = vadd.f32 %v380, %v553
        %v568 = vadd.f32 %v381, %v554
        %v569 = vadd.f32 %v382, %v543
        %v570 = vadd.f32 %v383, %v555
        %v571 = vadd.f32 %v384, %v556
        %v572 = vadd.f32 %v385, %v557
        %v573 = vadd.f32 %v386, %v551
        %574 = vset.pattern.permute.xlu0 6
        %575 = vperm.xlu0 %574, %v302
        %v576 = vpop.permute.xlu0 %575
        %578 = vset.pattern.permute.xlu0 6
        %579 = vperm.xlu0 %578, %v303
        %v580 = vpop.permute.xlu0 %579
        %v582 = vmul.f32 %v576, %v315
        %v583 = vmul.f32 %v576, %v316
        %v584 = vmul.f32 %v576, %v317
        %v585 = vmul.f32 %v576, %v318
        %v586 = vmul.f32 %v580, %v315
        %v587 = vmul.f32 %v580, %v316
        %v588 = vmul.f32 %v580, %v317
        %v589 = vmul.f32 %v580, %v318
        %598 = vrot.lane.b32.xlu0 %v582, 92
        %v599 = vpop.permute.xlu0 %598
        %600 = vrot.lane.b32.xlu0 %v583, 92
        %v601 = vpop.permute.xlu0 %600
        %602 = vrot.lane.b32.xlu0 %v584, 92
        %v603 = vpop.permute.xlu0 %602
        %604 = vrot.lane.b32.xlu0 %v585, 92
        %v605 = vpop.permute.xlu0 %604
        %606 = vrot.lane.b32.xlu0 %v586, 92
        %v607 = vpop.permute.xlu0 %606
        %608 = vrot.lane.b32.xlu0 %v587, 92
        %v609 = vpop.permute.xlu0 %608
        %610 = vrot.lane.b32.xlu0 %v588, 92
        %v611 = vpop.permute.xlu0 %610
        %612 = vrot.lane.b32.xlu0 %v589, 92
        %v613 = vpop.permute.xlu0 %612
        %vm614 = vcmask 752640
        %v615 = vsel %vm614, %v599, %v601
        %v616 = vsel %vm614, %v601, %v603
        %v617 = vsel %vm614, %v603, %v605
        %v618 = vsel %vm614, %v607, %v609
        %v619 = vsel %vm614, %v609, %v611
        %v620 = vsel %vm614, %v611, %v613
        %v629 = vadd.f32 %v442, %v615
        %v630 = vadd.f32 %v443, %v616
        %v631 = vadd.f32 %v444, %v617
        %v632 = vadd.f32 %v445, %v605
        %v633 = vadd.f32 %v446, %v618
        %v634 = vadd.f32 %v447, %v619
        %v635 = vadd.f32 %v448, %v620
        %v636 = vadd.f32 %v449, %v613
        %637 = vset.pattern.permute.xlu0 7
        %638 = vperm.xlu0 %637, %v302
        %v639 = vpop.permute.xlu0 %638
        %641 = vset.pattern.permute.xlu0 7
        %642 = vperm.xlu0 %641, %v303
        %v643 = vpop.permute.xlu0 %642
        %v645 = vmul.f32 %v639, %v315
        %v646 = vmul.f32 %v639, %v316
        %v647 = vmul.f32 %v639, %v317
        %v648 = vmul.f32 %v639, %v318
        %v649 = vmul.f32 %v643, %v315
        %v650 = vmul.f32 %v643, %v316
        %v651 = vmul.f32 %v643, %v317
        %v652 = vmul.f32 %v643, %v318
        %661 = vrot.lane.b32.xlu0 %v645, 92
        %v662 = vpop.permute.xlu0 %661
        %663 = vrot.lane.b32.xlu0 %v646, 92
        %v664 = vpop.permute.xlu0 %663
        %665 = vrot.lane.b32.xlu0 %v647, 92
        %v666 = vpop.permute.xlu0 %665
        %667 = vrot.lane.b32.xlu0 %v648, 92
        %v668 = vpop.permute.xlu0 %667
        %669 = vrot.lane.b32.xlu0 %v649, 92
        %v670 = vpop.permute.xlu0 %669
        %671 = vrot.lane.b32.xlu0 %v650, 92
        %v672 = vpop.permute.xlu0 %671
        %673 = vrot.lane.b32.xlu0 %v651, 92
        %v674 = vpop.permute.xlu0 %673
        %675 = vrot.lane.b32.xlu0 %v652, 92
        %v676 = vpop.permute.xlu0 %675
        %v677 = vsel %vm614, %v662, %v664
        %v678 = vsel %vm614, %v664, %v666
        %v679 = vsel %vm614, %v666, %v668
        %v680 = vsel %vm614, %v670, %v672
        %v681 = vsel %vm614, %v672, %v674
        %v682 = vsel %vm614, %v674, %v676
        %v691 = vadd.f32 %v504, %v677
        %v692 = vadd.f32 %v505, %v678
        %v693 = vadd.f32 %v506, %v679
        %v694 = vadd.f32 %v507, %v668
        %v695 = vadd.f32 %v508, %v680
        %v696 = vadd.f32 %v509, %v681
        %v697 = vadd.f32 %v510, %v682
        %v698 = vadd.f32 %v511, %v676
        %699 = vset.pattern.permute.xlu0 8
        %700 = vperm.xlu0 %699, %v302
        %v701 = vpop.permute.xlu0 %700
        %703 = vset.pattern.permute.xlu0 8
        %704 = vperm.xlu0 %703, %v303
        %v705 = vpop.permute.xlu0 %704
        %v707 = vmul.f32 %v701, %v315
        %v708 = vmul.f32 %v701, %v316
        %v709 = vmul.f32 %v701, %v317
        %v710 = vmul.f32 %v701, %v318
        %v711 = vmul.f32 %v705, %v315
        %v712 = vmul.f32 %v705, %v316
        %v713 = vmul.f32 %v705, %v317
        %v714 = vmul.f32 %v705, %v318
        %723 = vrot.lane.b32.xlu0 %v707, 92
        %v724 = vpop.permute.xlu0 %723
        %725 = vrot.lane.b32.xlu0 %v708, 92
        %v726 = vpop.permute.xlu0 %725
        %727 = vrot.lane.b32.xlu0 %v709, 92
        %v728 = vpop.permute.xlu0 %727
        %729 = vrot.lane.b32.xlu0 %v710, 92
        %v730 = vpop.permute.xlu0 %729
        %731 = vrot.lane.b32.xlu0 %v711, 92
        %v732 = vpop.permute.xlu0 %731
        %733 = vrot.lane.b32.xlu0 %v712, 92
        %v734 = vpop.permute.xlu0 %733
        %735 = vrot.lane.b32.xlu0 %v713, 92
        %v736 = vpop.permute.xlu0 %735
        %737 = vrot.lane.b32.xlu0 %v714, 92
        %v738 = vpop.permute.xlu0 %737
        %v739 = vsel %vm614, %v724, %v726
        %v740 = vsel %vm614, %v726, %v728
        %v741 = vsel %vm614, %v728, %v730
        %v742 = vsel %vm614, %v732, %v734
        %v743 = vsel %vm614, %v734, %v736
        %v744 = vsel %vm614, %v736, %v738
        %v753 = vadd.f32 %v566, %v739
        %v754 = vadd.f32 %v567, %v740
        %v755 = vadd.f32 %v568, %v741
        %v756 = vadd.f32 %v569, %v730
        %v757 = vadd.f32 %v570, %v742
        %v758 = vadd.f32 %v571, %v743
        %v759 = vadd.f32 %v572, %v744
        %v760 = vadd.f32 %v573, %v738
        %769 = vrot.lane.b32.xlu0 %v691, 127
        %v770 = vpop.permute.xlu0 %769
        %771 = vrot.lane.b32.xlu0 %v692, 127
        %v772 = vpop.permute.xlu0 %771
        %773 = vrot.lane.b32.xlu0 %v693, 127
        %v774 = vpop.permute.xlu0 %773
        %775 = vrot.lane.b32.xlu0 %v694, 127
        %v776 = vpop.permute.xlu0 %775
        %777 = vrot.lane.b32.xlu0 %v695, 127
        %v778 = vpop.permute.xlu0 %777
        %779 = vrot.lane.b32.xlu0 %v696, 127
        %v780 = vpop.permute.xlu0 %779
        %781 = vrot.lane.b32.xlu0 %v697, 127
        %v782 = vpop.permute.xlu0 %781
        %783 = vrot.lane.b32.xlu0 %v698, 127
        %v784 = vpop.permute.xlu0 %783
        %vm785 = vcmask 1039360
        %v786 = vsel %vm785, %v770, %v772
        %v787 = vsel %vm785, %v772, %v774
        %v788 = vsel %vm785, %v774, %v776
        %v789 = vsel %vm785, %v778, %v780
        %v790 = vsel %vm785, %v780, %v782
        %v791 = vsel %vm785, %v782, %v784
        %v800 = vadd.f32 %v629, %v786
        %v801 = vadd.f32 %v630, %v787
        %v802 = vadd.f32 %v631, %v788
        %v803 = vadd.f32 %v632, %v776
        %v804 = vadd.f32 %v633, %v789
        %v805 = vadd.f32 %v634, %v790
        %v806 = vadd.f32 %v635, %v791
        %v807 = vadd.f32 %v636, %v784
        %v808 = vld [vmem:[%s3] sm:$0xff]
        %v809 = vld [vmem:[%s3 + $0x8] sm:$0xff]
        %811 = vset.pattern.permute.xlu0 0
        %812 = vperm.xlu0 %811, %v808
        %v813 = vpop.permute.xlu0 %812
        %816 = vset.pattern.permute.xlu0 0
        %817 = vperm.xlu0 %816, %v809
        %v818 = vpop.permute.xlu0 %817
        %v820 = vadd.f32 %v753, %v813
        %v821 = vadd.f32 %v754, %v813
        %v822 = vadd.f32 %v755, %v813
        %v823 = vadd.f32 %v756, %v813
        %v824 = vadd.f32 %v757, %v818
        %v825 = vadd.f32 %v758, %v818
        %v826 = vadd.f32 %v759, %v818
        %v827 = vadd.f32 %v760, %v818
        %836 = vrot.lane.b32.xlu0 %v820, 126
        %v837 = vpop.permute.xlu0 %836
        %838 = vrot.lane.b32.xlu0 %v821, 126
        %v839 = vpop.permute.xlu0 %838
        %840 = vrot.lane.b32.xlu0 %v822, 126
        %v841 = vpop.permute.xlu0 %840
        %842 = vrot.lane.b32.xlu0 %v823, 126
        %v843 = vpop.permute.xlu0 %842
        %844 = vrot.lane.b32.xlu0 %v824, 126
        %v845 = vpop.permute.xlu0 %844
        %846 = vrot.lane.b32.xlu0 %v825, 126
        %v847 = vpop.permute.xlu0 %846
        %848 = vrot.lane.b32.xlu0 %v826, 126
        %v849 = vpop.permute.xlu0 %848
        %850 = vrot.lane.b32.xlu0 %v827, 126
        %v851 = vpop.permute.xlu0 %850
        %vm852 = vcmask 1031168
        %v853 = vsel %vm852, %v837, %v839
        %v854 = vsel %vm852, %v839, %v841
        %v855 = vsel %vm852, %v841, %v843
        %v856 = vsel %vm852, %v845, %v847
        %v857 = vsel %vm852, %v847, %v849
        %v858 = vsel %vm852, %v849, %v851
        %v867 = vadd.f32 %v800, %v853
        %v868 = vadd.f32 %v801, %v854
        %v869 = vadd.f32 %v802, %v855
        %v870 = vadd.f32 %v803, %v843
        %v871 = vadd.f32 %v804, %v856
        %v872 = vadd.f32 %v805, %v857
        %v873 = vadd.f32 %v806, %v858
        %v874 = vadd.f32 %v807, %v851
        %v875 = vmax.f32 %v867, 0.0
        %v876 = vmax.f32 %v868, 0.0
        %v877 = vmax.f32 %v869, 0.0
        %v878 = vmax.f32 %v870, 0.0
        %v879 = vmax.f32 %v871, 0.0
        %v880 = vmax.f32 %v872, 0.0
        %v881 = vmax.f32 %v873, 0.0
        %v882 = vmax.f32 %v874, 0.0
        %v883 = vld [vmem:[#allocation7] sm:$0x7]
        %v885 = vperm.slane %v883, 0
        %v886 = vperm.slane %v883, 1
        %v887 = vperm.slane %v883, 2
        %888 = vrot.lane.b32.xlu0 %v885, 7
        %v889 = vpop.permute.xlu0 %888
        %890 = vrot.lane.b32.xlu0 %v886, 7
        %v891 = vpop.permute.xlu0 %890
        %892 = vrot.lane.b32.xlu0 %v887, 7
        %v893 = vpop.permute.xlu0 %892
        %vm894 = vcmask 56320
        %v895 = vsel %vm894, %v889, %v891
        %v896 = vsel %vm894, %v891, %v893
        %v901 = vmul.f32 %v875, %v889
        %v902 = vmul.f32 %v876, %v895
        %v903 = vmul.f32 %v877, %v896
        %v904 = vmul.f32 %v878, %v893
        %v905 = vmul.f32 %v879, %v889
        %v906 = vmul.f32 %v880, %v895
        %v907 = vmul.f32 %v881, %v896
        %v908 = vmul.f32 %v882, %v893
        %917 = vrot.lane.b32.xlu0 %v901, 121
        %v918 = vpop.permute.xlu0 %917
        %919 = vrot.lane.b32.xlu0 %v902, 121
        %v920 = vpop.permute.xlu0 %919
        %921 = vrot.lane.b32.xlu0 %v903, 121
        %v922 = vpop.permute.xlu0 %921
        %923 = vrot.lane.b32.xlu0 %v904, 121
        %v924 = vpop.permute.xlu0 %923
        %925 = vrot.lane.b32.xlu0 %v905, 121
        %v926 = vpop.permute.xlu0 %925
        %927 = vrot.lane.b32.xlu0 %v906, 121
        %v928 = vpop.permute.xlu0 %927
        %929 = vrot.lane.b32.xlu0 %v907, 121
        %v930 = vpop.permute.xlu0 %929
        %931 = vrot.lane.b32.xlu0 %v908, 121
        %v932 = vpop.permute.xlu0 %931
        %vm933 = vcmask 990208
        %v934 = vsel %vm933, %v918, %v920
        %v935 = vsel %vm933, %v920, %v922
        %v936 = vsel %vm933, %v922, %v924
        %v937 = vsel %vm933, %v926, %v928
        %v938 = vsel %vm933, %v928, %v930
        %v939 = vsel %vm933, %v930, %v932
        %946 = vst [vmem:[#allocation2] sm:$0xff] %v934
        %947 = vst [vmem:[#allocation2 + $0x8] sm:$0xff] %v935
        %948 = vst [vmem:[#allocation2 + $0x10] sm:$0xff] %v936
        %949 = vst [vmem:[#allocation2 + $0x18] sm:$0xff] %v937
        %950 = vst [vmem:[#allocation2 + $0x20] sm:$0xff] %v938
        %951 = vst [vmem:[#allocation2 + $0x28] sm:$0xff] %v939
        %v952 = vld [vmem:[#allocation2] sm:$0xff]
        %v953 = vld [vmem:[#allocation2 + $0x8] sm:$0xff]
        %v954 = vld [vmem:[#allocation2 + $0x10] sm:$0xff]
        %v955 = vld [vmem:[#allocation2 + $0x18] sm:$0xff]
        %v956 = vld [vmem:[#allocation2 + $0x20] sm:$0xff]
        %v957 = vld [vmem:[#allocation2 + $0x28] sm:$0xff]
        %v958 = vld [vmem:[#allocation9] sm:$0xff]
        %v959 = vld [vmem:[#allocation9 + $0x8] sm:$0xff]
        %961 = vset.pattern.permute.xlu0 0
        %962 = vperm.xlu0 %961, %v958
        %v963 = vpop.permute.xlu0 %962
        %966 = vset.pattern.permute.xlu0 0
        %967 = vperm.xlu0 %966, %v959
        %v968 = vpop.permute.xlu0 %967
        %v970 = vmul.f32 %v963, %v952
        %v971 = vmul.f32 %v963, %v953
        %v972 = vmul.f32 %v963, %v954
        %v973 = vmul.f32 %v968, %v955
        %v974 = vmul.f32 %v968, %v956
        %v975 = vmul.f32 %v968, %v957
        %v976 = vadd.f32 %v970, 0.0
        %v977 = vadd.f32 %v971, 0.0
        %v978 = vadd.f32 %v972, 0.0
        %v979 = vadd.f32 %v973, 0.0
        %v980 = vadd.f32 %v974, 0.0
        %v981 = vadd.f32 %v975, 0.0
        %982 = vset.pattern.permute.xlu0 1
        %983 = vperm.xlu0 %982, %v958
        %v984 = vpop.permute.xlu0 %983
        %986 = vset.pattern.permute.xlu0 1
        %987 = vperm.xlu0 %986, %v959
        %v988 = vpop.permute.xlu0 %987
        %v990 = vmul.f32 %v984, %v952
        %v991 = vmul.f32 %v984, %v953
        %v992 = vmul.f32 %v984, %v954
        %v993 = vmul.f32 %v988, %v955
        %v994 = vmul.f32 %v988, %v956
        %v995 = vmul.f32 %v988, %v957
        %v996 = vadd.f32 %v990, 0.0
        %v997 = vadd.f32 %v991, 0.0
        %v998 = vadd.f32 %v992, 0.0
        %v999 = vadd.f32 %v993, 0.0
        %v1000 = vadd.f32 %v994, 0.0
        %v1001 = vadd.f32 %v995, 0.0
        %1002 = vset.pattern.permute.xlu0 2
        %1003 = vperm.xlu0 %1002, %v958
        %v1004 = vpop.permute.xlu0 %1003
        %1006 = vset.pattern.permute.xlu0 2
        %1007 = vperm.xlu0 %1006, %v959
        %v1008 = vpop.permute.xlu0 %1007
        %v1010 = vmul.f32 %v1004, %v952
        %v1011 = vmul.f32 %v1004, %v953
        %v1012 = vmul.f32 %v1004, %v954
        %v1013 = vmul.f32 %v1008, %v955
        %v1014 = vmul.f32 %v1008, %v956
        %v1015 = vmul.f32 %v1008, %v957
        %v1016 = vadd.f32 %v1010, 0.0
        %v1017 = vadd.f32 %v1011, 0.0
        %v1018 = vadd.f32 %v1012, 0.0
        %v1019 = vadd.f32 %v1013, 0.0
        %v1020 = vadd.f32 %v1014, 0.0
        %v1021 = vadd.f32 %v1015, 0.0
        %1022 = vset.pattern.permute.xlu0 3
        %1023 = vperm.xlu0 %1022, %v958
        %v1024 = vpop.permute.xlu0 %1023
        %1026 = vset.pattern.permute.xlu0 3
        %1027 = vperm.xlu0 %1026, %v959
        %v1028 = vpop.permute.xlu0 %1027
        %v1030 = vmul.f32 %v1024, %v952
        %v1031 = vmul.f32 %v1024, %v953
        %v1032 = vmul.f32 %v1024, %v954
        %v1033 = vmul.f32 %v1028, %v955
        %v1034 = vmul.f32 %v1028, %v956
        %v1035 = vmul.f32 %v1028, %v957
        %1042 = vrot.lane.b32.xlu0 %v1030, 110
        %v1043 = vpop.permute.xlu0 %1042
        %1044 = vrot.lane.b32.xlu0 %v1031, 110
        %v1045 = vpop.permute.xlu0 %1044
        %1046 = vrot.lane.b32.xlu0 %v1032, 110
        %v1047 = vpop.permute.xlu0 %1046
        %1048 = vrot.lane.b32.xlu0 %v1033, 110
        %v1049 = vpop.permute.xlu0 %1048
        %1050 = vrot.lane.b32.xlu0 %v1034, 110
        %v1051 = vpop.permute.xlu0 %1050
        %1052 = vrot.lane.b32.xlu0 %v1035, 110
        %v1053 = vpop.permute.xlu0 %1052
        %v1054 = vsel %vm427, %v1043, %v1045
        %v1055 = vsel %vm427, %v1045, %v1047
        %v1056 = vsel %vm427, %v1049, %v1051
        %v1057 = vsel %vm427, %v1051, %v1053
        %v1064 = vadd.f32 %v976, %v1054
        %v1065 = vadd.f32 %v977, %v1055
        %v1066 = vadd.f32 %v978, %v1047
        %v1067 = vadd.f32 %v979, %v1056
        %v1068 = vadd.f32 %v980, %v1057
        %v1069 = vadd.f32 %v981, %v1053
        %1070 = vset.pattern.permute.xlu0 4
        %1071 = vperm.xlu0 %1070, %v958
        %v1072 = vpop.permute.xlu0 %1071
        %1074 = vset.pattern.permute.xlu0 4
        %1075 = vperm.xlu0 %1074, %v959
        %v1076 = vpop.permute.xlu0 %1075
        %v1078 = vmul.f32 %v1072, %v952
        %v1079 = vmul.f32 %v1072, %v953
        %v1080 = vmul.f32 %v1072, %v954
        %v1081 = vmul.f32 %v1076, %v955
        %v1082 = vmul.f32 %v1076, %v956
        %v1083 = vmul.f32 %v1076, %v957
        %1090 = vrot.lane.b32.xlu0 %v1078, 110
        %v1091 = vpop.permute.xlu0 %1090
        %1092 = vrot.lane.b32.xlu0 %v1079, 110
        %v1093 = vpop.permute.xlu0 %1092
        %1094 = vrot.lane.b32.xlu0 %v1080, 110
        %v1095 = vpop.permute.xlu0 %1094
        %1096 = vrot.lane.b32.xlu0 %v1081, 110
        %v1097 = vpop.permute.xlu0 %1096
        %1098 = vrot.lane.b32.xlu0 %v1082, 110
        %v1099 = vpop.permute.xlu0 %1098
        %1100 = vrot.lane.b32.xlu0 %v1083, 110
        %v1101 = vpop.permute.xlu0 %1100
        %v1102 = vsel %vm427, %v1091, %v1093
        %v1103 = vsel %vm427, %v1093, %v1095
        %v1104 = vsel %vm427, %v1097, %v1099
        %v1105 = vsel %vm427, %v1099, %v1101
        %v1112 = vadd.f32 %v996, %v1102
        %v1113 = vadd.f32 %v997, %v1103
        %v1114 = vadd.f32 %v998, %v1095
        %v1115 = vadd.f32 %v999, %v1104
        %v1116 = vadd.f32 %v1000, %v1105
        %v1117 = vadd.f32 %v1001, %v1101
        %1118 = vset.pattern.permute.xlu0 5
        %1119 = vperm.xlu0 %1118, %v958
        %v1120 = vpop.permute.xlu0 %1119
        %1122 = vset.pattern.permute.xlu0 5
        %1123 = vperm.xlu0 %1122, %v959
        %v1124 = vpop.permute.xlu0 %1123
        %v1126 = vmul.f32 %v1120, %v952
        %v1127 = vmul.f32 %v1120, %v953
        %v1128 = vmul.f32 %v1120, %v954
        %v1129 = vmul.f32 %v1124, %v955
        %v1130 = vmul.f32 %v1124, %v956
        %v1131 = vmul.f32 %v1124, %v957
        %1138 = vrot.lane.b32.xlu0 %v1126, 110
        %v1139 = vpop.permute.xlu0 %1138
        %1140 = vrot.lane.b32.xlu0 %v1127, 110
        %v1141 = vpop.permute.xlu0 %1140
        %1142 = vrot.lane.b32.xlu0 %v1128, 110
        %v1143 = vpop.permute.xlu0 %1142
        %1144 = vrot.lane.b32.xlu0 %v1129, 110
        %v1145 = vpop.permute.xlu0 %1144
        %1146 = vrot.lane.b32.xlu0 %v1130, 110
        %v1147 = vpop.permute.xlu0 %1146
        %1148 = vrot.lane.b32.xlu0 %v1131, 110
        %v1149 = vpop.permute.xlu0 %1148
        %v1150 = vsel %vm427, %v1139, %v1141
        %v1151 = vsel %vm427, %v1141, %v1143
        %v1152 = vsel %vm427, %v1145, %v1147
        %v1153 = vsel %vm427, %v1147, %v1149
        %v1160 = vadd.f32 %v1016, %v1150
        %v1161 = vadd.f32 %v1017, %v1151
        %v1162 = vadd.f32 %v1018, %v1143
        %v1163 = vadd.f32 %v1019, %v1152
        %v1164 = vadd.f32 %v1020, %v1153
        %v1165 = vadd.f32 %v1021, %v1149
        %1166 = vset.pattern.permute.xlu0 6
        %1167 = vperm.xlu0 %1166, %v958
        %v1168 = vpop.permute.xlu0 %1167
        %1170 = vset.pattern.permute.xlu0 6
        %1171 = vperm.xlu0 %1170, %v959
        %v1172 = vpop.permute.xlu0 %1171
        %v1174 = vmul.f32 %v1168, %v952
        %v1175 = vmul.f32 %v1168, %v953
        %v1176 = vmul.f32 %v1168, %v954
        %v1177 = vmul.f32 %v1172, %v955
        %v1178 = vmul.f32 %v1172, %v956
        %v1179 = vmul.f32 %v1172, %v957
        %1186 = vrot.lane.b32.xlu0 %v1174, 92
        %v1187 = vpop.permute.xlu0 %1186
        %1188 = vrot.lane.b32.xlu0 %v1175, 92
        %v1189 = vpop.permute.xlu0 %1188
        %1190 = vrot.lane.b32.xlu0 %v1176, 92
        %v1191 = vpop.permute.xlu0 %1190
        %1192 = vrot.lane.b32.xlu0 %v1177, 92
        %v1193 = vpop.permute.xlu0 %1192
        %1194 = vrot.lane.b32.xlu0 %v1178, 92
        %v1195 = vpop.permute.xlu0 %1194
        %1196 = vrot.lane.b32.xlu0 %v1179, 92
        %v1197 = vpop.permute.xlu0 %1196
        %v1198 = vsel %vm614, %v1187, %v1189
        %v1199 = vsel %vm614, %v1189, %v1191
        %v1200 = vsel %vm614, %v1193, %v1195
        %v1201 = vsel %vm614, %v1195, %v1197
        %v1208 = vadd.f32 %v1064, %v1198
        %v1209 = vadd.f32 %v1065, %v1199
        %v1210 = vadd.f32 %v1066, %v1191
        %v1211 = vadd.f32 %v1067, %v1200
        %v1212 = vadd.f32 %v1068, %v1201
        %v1213 = vadd.f32 %v1069, %v1197
        %1214 = vset.pattern.permute.xlu0 7
        %1215 = vperm.xlu0 %1214, %v958
        %v1216 = vpop.permute.xlu0 %1215
        %1218 = vset.pattern.permute.xlu0 7
        %1219 = vperm.xlu0 %1218, %v959
        %v1220 = vpop.permute.xlu0 %1219
        %v1222 = vmul.f32 %v1216, %v952
        %v1223 = vmul.f32 %v1216, %v953
        %v1224 = vmul.f32 %v1216, %v954
        %v1225 = vmul.f32 %v1220, %v955
        %v1226 = vmul.f32 %v1220, %v956
        %v1227 = vmul.f32 %v1220, %v957
        %1234 = vrot.lane.b32.xlu0 %v1222, 92
        %v1235 = vpop.permute.xlu0 %1234
        %1236 = vrot.lane.b32.xlu0 %v1223, 92
        %v1237 = vpop.permute.xlu0 %1236
        %1238 = vrot.lane.b32.xlu0 %v1224, 92
        %v1239 = vpop.permute.xlu0 %1238
        %1240 = vrot.lane.b32.xlu0 %v1225, 92
        %v1241 = vpop.permute.xlu0 %1240
        %1242 = vrot.lane.b32.xlu0 %v1226, 92
        %v1243 = vpop.permute.xlu0 %1242
        %1244 = vrot.lane.b32.xlu0 %v1227, 92
        %v1245 = vpop.permute.xlu0 %1244
        %v1246 = vsel %vm614, %v1235, %v1237
        %v1247 = vsel %vm614, %v1237, %v1239
        %v1248 = vsel %vm614, %v1241, %v1243
        %v1249 = vsel %vm614, %v1243, %v1245
        %v1256 = vadd.f32 %v1112, %v1246
        %v1257 = vadd.f32 %v1113, %v1247
        %v1258 = vadd.f32 %v1114, %v1239
        %v1259 = vadd.f32 %v1115, %v1248
        %v1260 = vadd.f32 %v1116, %v1249
        %v1261 = vadd.f32 %v1117, %v1245
        %1262 = vset.pattern.permute.xlu0 8
        %1263 = vperm.xlu0 %1262, %v958
        %v1264 = vpop.permute.xlu0 %1263
        %1266 = vset.pattern.permute.xlu0 8
        %1267 = vperm.xlu0 %1266, %v959
        %v1268 = vpop.permute.xlu0 %1267
        %v1270 = vmul.f32 %v1264, %v952
        %v1271 = vmul.f32 %v1264, %v953
        %v1272 = vmul.f32 %v1264, %v954
        %v1273 = vmul.f32 %v1268, %v955
        %v1274 = vmul.f32 %v1268, %v956
        %v1275 = vmul.f32 %v1268, %v957
        %1282 = vrot.lane.b32.xlu0 %v1270, 92
        %v1283 = vpop.permute.xlu0 %1282
        %1284 = vrot.lane.b32.xlu0 %v1271, 92
        %v1285 = vpop.permute.xlu0 %1284
        %1286 = vrot.lane.b32.xlu0 %v1272, 92
        %v1287 = vpop.permute.xlu0 %1286
        %1288 = vrot.lane.b32.xlu0 %v1273, 92
        %v1289 = vpop.permute.xlu0 %1288
        %1290 = vrot.lane.b32.xlu0 %v1274, 92
        %v1291 = vpop.permute.xlu0 %1290
        %1292 = vrot.lane.b32.xlu0 %v1275, 92
        %v1293 = vpop.permute.xlu0 %1292
        %v1294 = vsel %vm614, %v1283, %v1285
        %v1295 = vsel %vm614, %v1285, %v1287
        %v1296 = vsel %vm614, %v1289, %v1291
        %v1297 = vsel %vm614, %v1291, %v1293
        %v1304 = vadd.f32 %v1160, %v1294
        %v1305 = vadd.f32 %v1161, %v1295
        %v1306 = vadd.f32 %v1162, %v1287
        %v1307 = vadd.f32 %v1163, %v1296
        %v1308 = vadd.f32 %v1164, %v1297
        %v1309 = vadd.f32 %v1165, %v1293
        %1316 = vrot.lane.b32.xlu0 %v1256, 127
        %v1317 = vpop.permute.xlu0 %1316
        %1318 = vrot.lane.b32.xlu0 %v1257, 127
        %v1319 = vpop.permute.xlu0 %1318
        %1320 = vrot.lane.b32.xlu0 %v1258, 127
        %v1321 = vpop.permute.xlu0 %1320
        %1322 = vrot.lane.b32.xlu0 %v1259, 127
        %v1323 = vpop.permute.xlu0 %1322
        %1324 = vrot.lane.b32.xlu0 %v1260, 127
        %v1325 = vpop.permute.xlu0 %1324
        %1326 = vrot.lane.b32.xlu0 %v1261, 127
        %v1327 = vpop.permute.xlu0 %1326
        %v1328 = vsel %vm785, %v1317, %v1319
        %v1329 = vsel %vm785, %v1319, %v1321
        %v1330 = vsel %vm785, %v1323, %v1325
        %v1331 = vsel %vm785, %v1325, %v1327
        %v1338 = vadd.f32 %v1208, %v1328
        %v1339 = vadd.f32 %v1209, %v1329
        %v1340 = vadd.f32 %v1210, %v1321
        %v1341 = vadd.f32 %v1211, %v1330
        %v1342 = vadd.f32 %v1212, %v1331
        %v1343 = vadd.f32 %v1213, %v1327
        %1350 = vrot.lane.b32.xlu0 %v1304, 126
        %v1351 = vpop.permute.xlu0 %1350
        %1352 = vrot.lane.b32.xlu0 %v1305, 126
        %v1353 = vpop.permute.xlu0 %1352
        %1354 = vrot.lane.b32.xlu0 %v1306, 126
        %v1355 = vpop.permute.xlu0 %1354
        %1356 = vrot.lane.b32.xlu0 %v1307, 126
        %v1357 = vpop.permute.xlu0 %1356
        %1358 = vrot.lane.b32.xlu0 %v1308, 126
        %v1359 = vpop.permute.xlu0 %1358
        %1360 = vrot.lane.b32.xlu0 %v1309, 126
        %v1361 = vpop.permute.xlu0 %1360
        %v1362 = vsel %vm852, %v1351, %v1353
        %v1363 = vsel %vm852, %v1353, %v1355
        %v1364 = vsel %vm852, %v1357, %v1359
        %v1365 = vsel %vm852, %v1359, %v1361
        %v1372 = vadd.f32 %v1338, %v1362
        %v1373 = vadd.f32 %v1339, %v1363
        %v1374 = vadd.f32 %v1340, %v1355
        %v1375 = vadd.f32 %v1341, %v1364
        %v1376 = vadd.f32 %v1342, %v1365
        %v1377 = vadd.f32 %v1343, %v1361
        %vm1378 = vcmask 1047640
        %v1379 = vsel %vm1378, %v1372, 0.0
        %v1380 = vsel %vm1378, %v1375, 0.0
        %v1381 = vadd.f32 %v1379, %v1380
        %v1382 = vrot.slane %v1381, 4
        %v1383 = vadd.f32 %v1381, %v1382
        %v1384 = vrot.slane %v1383, 2
        %v1385 = vadd.f32 %v1383, %v1384
        %v1386 = vrot.slane %v1385, 1
        %v1387 = vadd.f32 %v1385, %v1386
        %v1388 = vadd.f32 %v1373, %v1376
        %v1389 = vrot.slane %v1388, 4
        %v1390 = vadd.f32 %v1388, %v1389
        %v1391 = vrot.slane %v1390, 2
        %v1392 = vadd.f32 %v1390, %v1391
        %v1393 = vrot.slane %v1392, 1
        %v1394 = vadd.f32 %v1392, %v1393
        %vm1395 = vcmask 646144
        %v1396 = vsel %vm1395, %v1374, 0.0
        %v1397 = vsel %vm1395, %v1377, 0.0
        %v1398 = vadd.f32 %v1396, %v1397
        %v1399 = vrot.slane %v1398, 4
        %v1400 = vadd.f32 %v1398, %v1399
        %v1401 = vrot.slane %v1400, 2
        %v1402 = vadd.f32 %v1400, %v1401
        %v1403 = vrot.slane %v1402, 1
        %v1404 = vadd.f32 %v1402, %v1403
        %s1405 = sld [smem:[#allocation3]]
        %v1406 = vstv %s1405
        %v1407 = vadd.f32 %v1387, %v1406
        %v1408 = vadd.f32 %v1394, %v1406
        %v1409 = vadd.f32 %v1404, %v1406
        %v1413 = vrot.slane %v1408, 7
        %v1414 = vrot.slane %v1409, 6
        %vm1415 = vcmask 1040384
        %v1416 = vsel %vm1415, %v1407, %v1413
        %vm1417 = vcmask 1041408
        %v1418 = vsel %vm1417, %v1416, %v1414
        %1419 = vrot.lane.b32.xlu0 %v1418, 117
        %v1420 = vpop.permute.xlu0 %1419
        %v1421 = vrot.slane %v1420, 1
        %vm1422 = vcmask 957440
        %v1423 = vsel %vm1422, %v1420, %v1421
        %v1425 = vlaneseq
        %vm1426 = vcmp.ge.s32.totalorder %v1425, 0
        %vm1427 = vcmp.lt.s32.totalorder %v1425, 324
        %vm1428 = vmand %vm1426, %vm1427
        %1429 = vst.msk [vmem:[%s300] sm:$0x7] %vm1428, %v1423
        %s1430 = sand.u32 %s164, 1
        %s1431 = scalar_lea.sflag [#allocation6], %s1430
        %s1432 = sand.u32 %s164, 1
        %s1433 = smul.addr %s1432, 3
        %s1434 = scalar_lea.vmem [#allocation10], %s1433
        // Predicated region
        $region57: #{tpu_custom_call.1} parent=43 // pred_check
          %p1435 = pneg %p174
        $region58: #{tpu_custom_call.1} parent=43 // pred_check_branch
          %1437 = sbr.rel (%p1435) target = $region60
        $region59: #{tpu_custom_call.1} parent=43 // pred_region
          %1439 = vsyncadd %s1431, 0
          %s1440 = smul.addr %s25, 3
          %s1441 = scalar_lea.hbm %s6, %s1440
          %s1443 = sshll.u32 %s1434, 4
          %s1444 = int_to_ptr.vmem [resolvable:$true] %s1443
          %s1445 = sshll.u32 %s1441, 4
          %s1446 = int_to_ptr.hbm [resolvable:$true] %s1445
          %1448 = dma.vmem_to_hbm [thread:$0]  %s1444, 48, %s1446, %s1431
        $region60: #{tpu_custom_call.1} parent=43 // pred_fallthru
          _
      $region44: #{tpu_custom_call.1} parent=5 // pred_fallthru
        _
      %p1449 = scmp.le.s32.totalorder 2, %s20
      // Predicated region
      $region61: #{tpu_custom_call.1} parent=5 // pred_check
        %p1450 = pneg %p1449
      $region62: #{tpu_custom_call.1} parent=5 // pred_check_branch
        %1452 = sbr.rel (%p1450) target = $region64
      $region63: #{tpu_custom_call.1} parent=5 // pred_region
        %s1453 = ssub.s32 %s20, 2
        // Predicated region
        $region65: #{tpu_custom_call.1} parent=63 // pred_check
          %p1454 = pneg %p180
        $region66: #{tpu_custom_call.1} parent=63 // pred_check_branch
          %1456 = sbr.rel (%p1454) target = $region68
        $region67: #{tpu_custom_call.1} parent=63 // pred_region
          %s1457 = sand.u32 %s165, 1
          %s1458 = scalar_lea.sflag [#allocation6], %s1457
          %s1459 = sand.u32 %s165, 1
          %s1460 = smul.addr %s1459, 3
          %s1461 = scalar_lea.vmem [#allocation10], %s1460
          %1463 = dma.done %s1458, 48
        $region68: #{tpu_custom_call.1} parent=63 // pred_fallthru
          _
      $region64: #{tpu_custom_call.1} parent=5 // pred_fallthru
        _
    $region6: #{tpu_custom_call.1} parent=1 // loop_footer
      %s24 = sadd.s32 1, %s20
    $region7: #{tpu_custom_call.1} parent=1 // loop_footer_branch
      %19 = sbr.rel target = $region3
    $region8: #{tpu_custom_call.1} parent=1 // loop_exit
      _
    %1464 = vsyncpa [#allocation5], 1
    %s1465 = scalar_lea.sflag [#allocation5], 1
    %1466 = vsyncpa %s1465, 1
    %1467 = vsyncpa [#allocation8], 1
    %1468 = vsyncpa [#allocation6], 1
    %s1469 = scalar_lea.sflag [#allocation6], 1
    %1470 = vsyncpa %s1469, 1

</llo_original>
